<compile_context>
chip_gen: v7x
topology: tpu7x:2x2x1
jax: 0.10.0
libtpu: 0.0.40
codegen_flags: <defaults>
</compile_context>

<pallas_src>
import jax
import jax.numpy as jnp
from jax import lax
from jax.experimental import pallas as pl
from jax.experimental.pallas import tpu as pltpu


def _density_mlp_kernel(x_ref, t_ref, w1x_ref, w1t_ref, b1_ref,
                        w2_ref, b2_ref, w3_ref, b3_ref, o_ref):
    x = x_ref[...]                       # (TN, dim)  row-major input tile
    t = t_ref[...]                       # (1, TN)    time row (lane-major)

    # fc1 + relu with the torch.cat fused in (feature-major output):
    #   H1 = W1[:dim]^T @ x^T + W1[dim]^T * t + b1   -> (hidden, TN)
    # dot_general contracts both operands on their last (=dim) axis, the
    # standard "q @ k^T" MXU pattern, so x is never transposed in VMEM.
    h1 = lax.dot_general(w1x_ref[...], x,
                         dimension_numbers=(((1,), (1,)), ((), ())),
                         preferred_element_type=jnp.float32)
    h1 = jnp.maximum(h1 + w1t_ref[...] * t + b1_ref[...], 0.0)

    # fc2 + relu: (hidden, hidden) @ (hidden, TN) on the MXU.
    h2 = jnp.dot(w2_ref[...], h1, preferred_element_type=jnp.float32)
    h2 = jnp.maximum(h2 + b2_ref[...], 0.0)

    # fc3 + sigmoid: hidden -> 1 as a VPU multiply + cross-sublane reduce
    # (avoids an M=1 MXU matmul); result is a lane-dense (1, TN) row.
    z = jnp.sum(h2 * w3_ref[...], axis=0, keepdims=True) + b3_ref[...]
    o_ref[...] = jax.nn.sigmoid(z).astype(o_ref.dtype)


def _round_up(a, b):
    return -(-a // b) * b


def density_model_forward(x, t, params, *, tile_rows=8192):
    """x: (N, dim) f32, t: (N, 1) f32 -> (N, 1) f32 (sigmoid density)."""
    w1, b1, w2, b2, w3, b3 = params
    n, dim = x.shape
    hidden = w1.shape[1]

    # Tiny, one-off weight plumbing in the wrapper:
    #   * split fc1's weight so cat((x, t), 1) never materializes,
    #   * transpose weights to (out, in) / column biases for the
    #     feature-major kernel layout.
    w1x = w1[:dim, :].T                  # (hidden, dim)
    w1t = w1[dim:dim + 1, :].T           # (hidden, 1)
    b1c = b1.reshape(hidden, 1)          # (hidden, 1)
    w2t = w2.T                           # (hidden, hidden)
    b2c = b2.reshape(hidden, 1)          # (hidden, 1)
    w3c = w3.reshape(hidden, 1)          # (hidden, 1)
    b3c = b3.reshape(1, 1)               # (1, 1)

    # (N, 1) -> (1, N) is a contiguous reshape (no data movement).
    t_row = t.reshape(1, n)

    # Row tile must be a multiple of 128 (lane dim of the t / output blocks);
    # N is padded up to a full grid of tiles, padded rows sliced off below.
    tn = max(128, min(_round_up(tile_rows, 128), _round_up(n, 128)))
    n_pad = _round_up(n, tn)
    if n_pad != n:
        x = jnp.pad(x, ((0, n_pad - n), (0, 0)))
        t_row = jnp.pad(t_row, ((0, 0), (0, n_pad - n)))
    num_tiles = n_pad // tn

    def const_spec(a):
        # Whole (tiny) array, same block every grid step -> VMEM-resident.
        return pl.BlockSpec(a.shape, lambda i: (0,) * a.ndim)

    cost = pl.CostEstimate(
        flops=2 * n_pad * ((dim + 1) * hidden + hidden * hidden + hidden),
        transcendentals=n_pad,
        bytes_accessed=4 * (n_pad * (dim + 2)
                            + (dim + 1) * hidden + hidden * hidden
                            + 3 * hidden + 1),
    )

    out = pl.pallas_call(
        _density_mlp_kernel,
        out_shape=jax.ShapeDtypeStruct((1, n_pad), jnp.float32),
        grid=(num_tiles,),
        in_specs=[
            pl.BlockSpec((tn, dim), lambda i: (i, 0)),   # x tile (row-major)
            pl.BlockSpec((1, tn), lambda i: (0, i)),     # t tile (lane-major)
            const_spec(w1x), const_spec(w1t), const_spec(b1c),
            const_spec(w2t), const_spec(b2c),
            const_spec(w3c), const_spec(b3c),
        ],
        out_specs=pl.BlockSpec((1, tn), lambda i: (0, i)),
        compiler_params=pltpu.CompilerParams(
            dimension_semantics=("parallel",)),
        cost_estimate=cost,
    )(x, t_row, w1x, w1t, b1c, w2t, b2c, w3c, b3c)

    # (1, N) -> (N, 1): contiguous reshape after dropping padded columns.
    return out[:, :n].reshape(n, 1)


def init_params(dim, key):
    """Deterministic synthetic parameters matching the module's shapes.

    fc1: (dim+1)->32, fc2: 32->32, fc3: 32->1.
    Weights stored as (in, out); biases as (1, out).
    """
    k1, k2, k3, k4, k5, k6 = jax.random.split(key, 6)
    w1 = jax.random.normal(k1, (dim + 1, 32), jnp.float32) * 0.2
    b1 = jax.random.normal(k2, (1, 32), jnp.float32) * 0.1
    w2 = jax.random.normal(k3, (32, 32), jnp.float32) * 0.2
    b2 = jax.random.normal(k4, (1, 32), jnp.float32) * 0.1
    w3 = jax.random.normal(k5, (32, 1), jnp.float32) * 0.2
    b3 = jax.random.normal(k6, (1, 1), jnp.float32) * 0.1
    return (w1, b1, w2, b2, w3, b3)


def density_model_ref(x, t, params):
    """Pure-JAX reference of the PyTorch forward, for sanity checking."""
    w1, b1, w2, b2, w3, b3 = params
    x_t = jnp.concatenate((x, t), axis=1)
    h1 = jnp.maximum(x_t @ w1 + b1, 0.0)
    h2 = jnp.maximum(h1 @ w2 + b2, 0.0)
    return jax.nn.sigmoid(h2 @ w3 + b3)


if __name__ == "__main__":
    dim = 4        # feature dimension of x
    batch = 8      # number of samples

    key = jax.random.PRNGKey(0)
    kx, kt, kp = jax.random.split(key, 3)
    x = jax.random.normal(kx, (batch, dim), jnp.float32)
    t = jax.random.uniform(kt, (batch, 1), jnp.float32)
    params = init_params(dim, kp)

    out = jax.block_until_ready(density_model_forward(x, t, params))
    ref = density_model_ref(x, t, params)
    assert out.shape == (batch, 1)
    assert jnp.allclose(out, ref, atol=1e-4, rtol=1e-4)

    # Exercise the multi-tile grid + remainder-padding path at small scale
    # (batch=300 with 128-row tiles -> grid of 3, last tile padded).
    kx2, kt2 = jax.random.split(kt)
    x2 = jax.random.normal(kx2, (300, dim), jnp.float32)
    t2 = jax.random.uniform(kt2, (300, 1), jnp.float32)
    out2 = jax.block_until_ready(
        density_model_forward(x2, t2, params, tile_rows=128))
    ref2 = density_model_ref(x2, t2, params)
    assert out2.shape == (300, 1)
    assert jnp.allclose(out2, ref2, atol=1e-4, rtol=1e-4)

    print("KERNEL_OK")
</pallas_src>

<mosaic_0001>
module attributes {stable_mosaic.version = 11 : i64} {
  func.func @_density_mlp_kernel(%arg0: i32, %arg1: memref<128x4xf32, #tpu.memory_space<vmem>>, %arg2: memref<1x128xf32, #tpu.memory_space<vmem>>, %arg3: memref<32x4xf32, #tpu.memory_space<vmem>>, %arg4: memref<32x1xf32, #tpu.memory_space<vmem>>, %arg5: memref<32x1xf32, #tpu.memory_space<vmem>>, %arg6: memref<32x32xf32, #tpu.memory_space<vmem>>, %arg7: memref<32x1xf32, #tpu.memory_space<vmem>>, %arg8: memref<32x1xf32, #tpu.memory_space<vmem>>, %arg9: memref<1x1xf32, #tpu.memory_space<vmem>>, %arg10: memref<1x128xf32, #tpu.memory_space<vmem>>) attributes {dimension_semantics = [#tpu.dimension_semantics<parallel>], iteration_bounds = array<i64: 1>, scalar_prefetch = 0 : i64, scratch_operands = 0 : i64, tpu.core_type = #tpu.core_type<tc>, window_params = [{transform_indices = @transform_0, window_bounds = array<i64: 128, 4>}, {transform_indices = @transform_1, window_bounds = array<i64: 1, 128>}, {pipeline_mode = #tpu.pipeline_mode<synchronous>, transform_indices = @transform_2, window_bounds = array<i64: 32, 4>}, {pipeline_mode = #tpu.pipeline_mode<synchronous>, transform_indices = @transform_3, window_bounds = array<i64: 32, 1>}, {pipeline_mode = #tpu.pipeline_mode<synchronous>, transform_indices = @transform_4, window_bounds = array<i64: 32, 1>}, {pipeline_mode = #tpu.pipeline_mode<synchronous>, transform_indices = @transform_5, window_bounds = array<i64: 32, 32>}, {pipeline_mode = #tpu.pipeline_mode<synchronous>, transform_indices = @transform_6, window_bounds = array<i64: 32, 1>}, {pipeline_mode = #tpu.pipeline_mode<synchronous>, transform_indices = @transform_7, window_bounds = array<i64: 32, 1>}, {pipeline_mode = #tpu.pipeline_mode<synchronous>, transform_indices = @transform_8, window_bounds = array<i64: 1, 1>}, {transform_indices = @transform_9, window_bounds = array<i64: 1, 128>}]} {
    %c0 = arith.constant 0 : index
    %c0_0 = arith.constant 0 : index
    %0 = vector.load %arg1[%c0, %c0_0] : memref<128x4xf32, #tpu.memory_space<vmem>>, vector<128x4xf32>
    %c0_1 = arith.constant 0 : index
    %c0_2 = arith.constant 0 : index
    %1 = vector.load %arg2[%c0_1, %c0_2] : memref<1x128xf32, #tpu.memory_space<vmem>>, vector<1x128xf32>
    %c0_3 = arith.constant 0 : index
    %c0_4 = arith.constant 0 : index
    %2 = vector.load %arg3[%c0_3, %c0_4] : memref<32x4xf32, #tpu.memory_space<vmem>>, vector<32x4xf32>
    %cst = arith.constant dense<0.000000e+00> : vector<32x128xf32>
    %3 = tpu.matmul %2, %0, %cst {dimension_numbers = #tpu.dot_dimension_numbers<[1], [1], [0], [0], [0, 0, 1, 0], [], []>} : vector<32x4xf32>, vector<128x4xf32>, vector<32x128xf32> -> vector<32x128xf32>
    %c0_5 = arith.constant 0 : index
    %c0_6 = arith.constant 0 : index
    %4 = vector.load %arg4[%c0_5, %c0_6] : memref<32x1xf32, #tpu.memory_space<vmem>>, vector<32x1xf32>
    %5 = vector.broadcast %4 : vector<32x1xf32> to vector<32x128xf32>
    %6 = vector.broadcast %1 : vector<1x128xf32> to vector<32x128xf32>
    %7 = arith.mulf %5, %6 : vector<32x128xf32>
    %8 = arith.addf %3, %7 : vector<32x128xf32>
    %c0_7 = arith.constant 0 : index
    %c0_8 = arith.constant 0 : index
    %9 = vector.load %arg5[%c0_7, %c0_8] : memref<32x1xf32, #tpu.memory_space<vmem>>, vector<32x1xf32>
    %10 = vector.broadcast %9 : vector<32x1xf32> to vector<32x128xf32>
    %11 = arith.addf %8, %10 : vector<32x128xf32>
    %cst_9 = arith.constant 0.000000e+00 : f32
    %12 = vector.broadcast %cst_9 : f32 to vector<32x128xf32>
    %13 = arith.maximumf %11, %12 : vector<32x128xf32>
    %c0_10 = arith.constant 0 : index
    %c0_11 = arith.constant 0 : index
    %14 = vector.load %arg6[%c0_10, %c0_11] : memref<32x32xf32, #tpu.memory_space<vmem>>, vector<32x32xf32>
    %cst_12 = arith.constant dense<0.000000e+00> : vector<32x128xf32>
    %15 = tpu.matmul %14, %13, %cst_12 {dimension_numbers = #tpu.dot_dimension_numbers<[1], [0], [0], [1], [0, 0, 1, 1], [], []>} : vector<32x32xf32>, vector<32x128xf32>, vector<32x128xf32> -> vector<32x128xf32>
    %c0_13 = arith.constant 0 : index
    %c0_14 = arith.constant 0 : index
    %16 = vector.load %arg7[%c0_13, %c0_14] : memref<32x1xf32, #tpu.memory_space<vmem>>, vector<32x1xf32>
    %17 = vector.broadcast %16 : vector<32x1xf32> to vector<32x128xf32>
    %18 = arith.addf %15, %17 : vector<32x128xf32>
    %cst_15 = arith.constant 0.000000e+00 : f32
    %19 = vector.broadcast %cst_15 : f32 to vector<32x128xf32>
    %20 = arith.maximumf %18, %19 : vector<32x128xf32>
    %c0_16 = arith.constant 0 : index
    %c0_17 = arith.constant 0 : index
    %21 = vector.load %arg8[%c0_16, %c0_17] : memref<32x1xf32, #tpu.memory_space<vmem>>, vector<32x1xf32>
    %22 = vector.broadcast %21 : vector<32x1xf32> to vector<32x128xf32>
    %23 = arith.mulf %20, %22 : vector<32x128xf32>
    %cst_18 = arith.constant dense<0.000000e+00> : vector<128xf32>
    %24 = vector.multi_reduction <add>, %23, %cst_18 [0] : vector<32x128xf32> to vector<128xf32>
    %25 = vector.shape_cast %24 : vector<128xf32> to vector<1x128xf32>
    %c0_19 = arith.constant 0 : index
    %c0_20 = arith.constant 0 : index
    %26 = vector.load %arg9[%c0_19, %c0_20] : memref<1x1xf32, #tpu.memory_space<vmem>>, vector<1x1xf32>
    %27 = vector.broadcast %26 : vector<1x1xf32> to vector<1x128xf32>
    %28 = arith.addf %25, %27 : vector<1x128xf32>
    %29 = arith.negf %28 : vector<1x128xf32>
    %30 = math.exp %29 : vector<1x128xf32>
    %cst_21 = arith.constant 1.000000e+00 : f32
    %31 = vector.broadcast %cst_21 : f32 to vector<1x128xf32>
    %32 = arith.addf %31, %30 : vector<1x128xf32>
    %33 = arith.divf %31, %32 : vector<1x128xf32>
    %c0_22 = arith.constant 0 : index
    %c0_23 = arith.constant 0 : index
    %34 = vector.load %arg10[%c0_22, %c0_23] : memref<1x128xf32, #tpu.memory_space<vmem>>, vector<1x128xf32>
    tpu.vector_store %arg10[%c0_22, %c0_23], %33 {strides = array<i32>} : memref<1x128xf32, #tpu.memory_space<vmem>>, vector<1x128xf32>,
    return
  }
  func.func @transform_0(%arg0: i32) -> (i32, i32) {
    %c0_i32 = arith.constant 0 : i32
    %c0_i32_0 = arith.constant 0 : i32
    return %arg0, %c0_i32 : i32, i32
  }
  func.func @transform_1(%arg0: i32) -> (i32, i32) {
    %c0_i32 = arith.constant 0 : i32
    %c0_i32_0 = arith.constant 0 : i32
    return %c0_i32, %arg0 : i32, i32
  }
  func.func @transform_2(%arg0: i32) -> (i32, i32) {
    %c0_i32 = arith.constant 0 : i32
    %c0_i32_0 = arith.constant 0 : i32
    %c0_i32_1 = arith.constant 0 : i32
    return %c0_i32, %c0_i32_0 : i32, i32
  }
  func.func @transform_3(%arg0: i32) -> (i32, i32) {
    %c0_i32 = arith.constant 0 : i32
    %c0_i32_0 = arith.constant 0 : i32
    %c0_i32_1 = arith.constant 0 : i32
    return %c0_i32, %c0_i32_0 : i32, i32
  }
  func.func @transform_4(%arg0: i32) -> (i32, i32) {
    %c0_i32 = arith.constant 0 : i32
    %c0_i32_0 = arith.constant 0 : i32
    %c0_i32_1 = arith.constant 0 : i32
    return %c0_i32, %c0_i32_0 : i32, i32
  }
  func.func @transform_5(%arg0: i32) -> (i32, i32) {
    %c0_i32 = arith.constant 0 : i32
    %c0_i32_0 = arith.constant 0 : i32
    %c0_i32_1 = arith.constant 0 : i32
    return %c0_i32, %c0_i32_0 : i32, i32
  }
  func.func @transform_6(%arg0: i32) -> (i32, i32) {
    %c0_i32 = arith.constant 0 : i32
    %c0_i32_0 = arith.constant 0 : i32
    %c0_i32_1 = arith.constant 0 : i32
    return %c0_i32, %c0_i32_0 : i32, i32
  }
  func.func @transform_7(%arg0: i32) -> (i32, i32) {
    %c0_i32 = arith.constant 0 : i32
    %c0_i32_0 = arith.constant 0 : i32
    %c0_i32_1 = arith.constant 0 : i32
    return %c0_i32, %c0_i32_0 : i32, i32
  }
  func.func @transform_8(%arg0: i32) -> (i32, i32) {
    %c0_i32 = arith.constant 0 : i32
    %c0_i32_0 = arith.constant 0 : i32
    %c0_i32_1 = arith.constant 0 : i32
    return %c0_i32, %c0_i32_0 : i32, i32
  }
  func.func @transform_9(%arg0: i32) -> (i32, i32) {
    %c0_i32 = arith.constant 0 : i32
    %c0_i32_0 = arith.constant 0 : i32
    return %c0_i32, %arg0 : i32, i32
  }
}

</mosaic_0001>

<llo_original>
// kernel: tpu_custom_call.1
$region0: #{tpu_custom_call.1}
  #allocation0 [shape = 'u32[]', space=smem, size = 0x4, offset = 0x4, fixed_abs, tag = 'smem constant byte address 0x4 - core index']
  #allocation1 [shape = 'u32[144,128]{1,0:T(1,128)}', space=vmem, size = 0x12000, scoped, tag = 'internal scratch']
  #allocation2 [shape = 'f32[1,1]{1,0:T(1,128)S(1)}', space=vmem, size = 0x200, scoped, tag = 'scoped memory for tpu_custom_call.1']
  %s0 = inlined_call_operand.vmem [shape: f32[128,4], index: 0, kind: input, shape index: {}]
  %s1 = inlined_call_operand.vmem [shape: f32[1,128], index: 1, kind: input, shape index: {}]
  %s2 = inlined_call_operand.vmem [shape: f32[32,4], index: 2, kind: input, shape index: {}]
  %s3 = inlined_call_operand.vmem [shape: f32[32,1], index: 3, kind: input, shape index: {}]
  %s4 = inlined_call_operand.vmem [shape: f32[32,1], index: 4, kind: input, shape index: {}]
  %s5 = inlined_call_operand.vmem [shape: f32[32,32], index: 5, kind: input, shape index: {}]
  %s6 = inlined_call_operand.vmem [shape: f32[32,1], index: 6, kind: input, shape index: {}]
  %s7 = inlined_call_operand.vmem [shape: f32[32,1], index: 7, kind: input, shape index: {}]
  %s8 = inlined_call_operand.<no memory space> [shape: f32[1,1], index: 8, kind: input, shape index: {}]
  %s9 = inlined_call_operand.hbm [shape: f32[1,128], index: 9, kind: output, shape index: {}]
  %s10 = sld [smem:[#allocation0]]
  $region46: #{tpu_custom_call.1} parent=0
    _
  %s12 = ssub.s32 1, %s10
  %s13 = scalar_select 0, %s12, %s10
  %v14 = vstv %s8
  %15 = vst [vmem:[#allocation2] sm:$0x1] %v14
  $region1: #{tpu_custom_call.1} parent=0
    #allocation3 [shape = 'u8[512]{0}', space=vmem, size = 0x400, scoped, tag = 'output window, operand 0, single buffered']
    #allocation4 [shape = 's32[1]{0}', space=sflag, size = 0x4, scoped, tag = 'scoped memory for tpu_custom_call.1']
    %16 = vsyncpa [#allocation4], 0
    // Predicated region
    $region2: #{tpu_custom_call.1} parent=1 // pred_check
      _
    $region3: #{tpu_custom_call.1} parent=1 // pred_check_branch
      %18 = sbr.rel (0) target = $region5
    $region4: #{tpu_custom_call.1} parent=1 // pred_region
      _
    $region5: #{tpu_custom_call.1} parent=1 // pred_fallthru
      _
    // Predicated region
    $region6: #{tpu_custom_call.1} parent=1 // pred_check
      _
    $region7: #{tpu_custom_call.1} parent=1 // pred_check_branch
      %20 = sbr.rel (0) target = $region9
    $region8: #{tpu_custom_call.1} parent=1 // pred_region
      _
    $region9: #{tpu_custom_call.1} parent=1 // pred_fallthru
      _
    // Predicated region
    $region10: #{tpu_custom_call.1} parent=1 // pred_check
      _
    $region11: #{tpu_custom_call.1} parent=1 // pred_check_branch
      %22 = sbr.rel (0) target = $region13
    $region12: #{tpu_custom_call.1} parent=1 // pred_region
      _
    $region13: #{tpu_custom_call.1} parent=1 // pred_fallthru
      _
    // Predicated region
    $region14: #{tpu_custom_call.1} parent=1 // pred_check
      _
    $region15: #{tpu_custom_call.1} parent=1 // pred_check_branch
      %24 = sbr.rel (0) target = $region17
    $region16: #{tpu_custom_call.1} parent=1 // pred_region
      _
    $region17: #{tpu_custom_call.1} parent=1 // pred_fallthru
      _
    // Predicated region
    $region18: #{tpu_custom_call.1} parent=1 // pred_check
      _
    $region19: #{tpu_custom_call.1} parent=1 // pred_check_branch
      %26 = sbr.rel (0) target = $region21
    $region20: #{tpu_custom_call.1} parent=1 // pred_region
      _
    $region21: #{tpu_custom_call.1} parent=1 // pred_fallthru
      _
    // Predicated region
    $region22: #{tpu_custom_call.1} parent=1 // pred_check
      _
    $region23: #{tpu_custom_call.1} parent=1 // pred_check_branch
      %28 = sbr.rel (0) target = $region25
    $region24: #{tpu_custom_call.1} parent=1 // pred_region
      _
    $region25: #{tpu_custom_call.1} parent=1 // pred_fallthru
      _
    // Predicated region
    $region26: #{tpu_custom_call.1} parent=1 // pred_check
      _
    $region27: #{tpu_custom_call.1} parent=1 // pred_check_branch
      %30 = sbr.rel (0) target = $region29
    $region28: #{tpu_custom_call.1} parent=1 // pred_region
      _
    $region29: #{tpu_custom_call.1} parent=1 // pred_fallthru
      _
    // Predicated region
    $region30: #{tpu_custom_call.1} parent=1 // pred_check
      _
    $region31: #{tpu_custom_call.1} parent=1 // pred_check_branch
      %32 = sbr.rel (0) target = $region33
    $region32: #{tpu_custom_call.1} parent=1 // pred_region
      _
    $region33: #{tpu_custom_call.1} parent=1 // pred_fallthru
      _
    // Predicated region
    $region34: #{tpu_custom_call.1} parent=1 // pred_check
      _
    $region35: #{tpu_custom_call.1} parent=1 // pred_check_branch
      %34 = sbr.rel (0) target = $region37
    $region36: #{tpu_custom_call.1} parent=1 // pred_region
      _
    $region37: #{tpu_custom_call.1} parent=1 // pred_fallthru
      _
    %v35 = vld [vmem:[%s0] sm:$0xff]
    %v36 = vld [vmem:[%s0 + $0x8] sm:$0xff]
    %v37 = vld [vmem:[%s0 + $0x10] sm:$0xff]
    %v38 = vld [vmem:[%s0 + $0x18] sm:$0xff]
    %v39 = vld [vmem:[%s0 + $0x20] sm:$0xff]
    %v40 = vld [vmem:[%s0 + $0x28] sm:$0xff]
    %v41 = vld [vmem:[%s0 + $0x30] sm:$0xff]
    %v42 = vld [vmem:[%s0 + $0x38] sm:$0xff]
    %v43 = vld [vmem:[%s0 + $0x40] sm:$0xff]
    %v44 = vld [vmem:[%s0 + $0x48] sm:$0xff]
    %v45 = vld [vmem:[%s0 + $0x50] sm:$0xff]
    %v46 = vld [vmem:[%s0 + $0x58] sm:$0xff]
    %v47 = vld [vmem:[%s0 + $0x60] sm:$0xff]
    %v48 = vld [vmem:[%s0 + $0x68] sm:$0xff]
    %v49 = vld [vmem:[%s0 + $0x70] sm:$0xff]
    %v50 = vld [vmem:[%s0 + $0x78] sm:$0xff]
    %v51 = vld [vmem:[%s1] sm:$0x1]
    %v52 = vld [vmem:[%s2] sm:$0xff]
    %v53 = vld [vmem:[%s2 + $0x8] sm:$0xff]
    %v54 = vld [vmem:[%s2 + $0x10] sm:$0xff]
    %v55 = vld [vmem:[%s2 + $0x18] sm:$0xff]
    %v56 = vld [vmem:[%s3] sm:$0xff]
    %v57 = vld [vmem:[%s3 + $0x8] sm:$0xff]
    %v58 = vld [vmem:[%s3 + $0x10] sm:$0xff]
    %v59 = vld [vmem:[%s3 + $0x18] sm:$0xff]
    %61 = vset.pattern.permute.xlu0 0
    %62 = vperm.xlu0 %61, %v56
    %v63 = vpop.permute.xlu0 %62
    %66 = vset.pattern.permute.xlu0 0
    %67 = vperm.xlu0 %66, %v57
    %v68 = vpop.permute.xlu0 %67
    %71 = vset.pattern.permute.xlu0 0
    %72 = vperm.xlu0 %71, %v58
    %v73 = vpop.permute.xlu0 %72
    %76 = vset.pattern.permute.xlu0 0
    %77 = vperm.xlu0 %76, %v59
    %v78 = vpop.permute.xlu0 %77
    %v81 = vlaneseq
    %v82 = vshrl.u32 %v81, 7
    %v83 = vsub.s32 0, %v82
    %v84 = vrot.slane %v51, %v83
    %v86 = vmul.f32 %v63, %v84
    %v87 = vmul.f32 %v68, %v84
    %v88 = vmul.f32 %v73, %v84
    %v89 = vmul.f32 %v78, %v84
    %vm90 = vcmask 31744
    %v92 = vsel %vm90, %v52, 0
    %v95 = vsel %vm90, %v53, 0
    %v98 = vsel %vm90, %v54, 0
    %v101 = vsel %vm90, %v55, 0
    %v104 = vsel %vm90, %v35, 0
    %v107 = vsel %vm90, %v36, 0
    %v110 = vsel %vm90, %v37, 0
    %v113 = vsel %vm90, %v38, 0
    %v116 = vsel %vm90, %v39, 0
    %v119 = vsel %vm90, %v40, 0
    %v122 = vsel %vm90, %v41, 0
    %v125 = vsel %vm90, %v42, 0
    %v128 = vsel %vm90, %v43, 0
    %v131 = vsel %vm90, %v44, 0
    %v134 = vsel %vm90, %v45, 0
    %v137 = vsel %vm90, %v46, 0
    %v140 = vsel %vm90, %v47, 0
    %v143 = vsel %vm90, %v48, 0
    %v146 = vsel %vm90, %v49, 0
    %v149 = vsel %vm90, %v50, 0
    %151 = vmatprep.subr.mxu0 0.0
    %152 = vmatpush1.xpose.msra.mxu0 %v104
    %153 = vmatprep.subr.mxu0 0.0
    %154 = vmatpush1.xpose.msra.mxu0 %v107
    %155 = vmatprep.subr.mxu0 0.0
    %156 = vmatpush1.xpose.msra.mxu0 %v110
    %157 = vmatprep.subr.mxu0 0.0
    %158 = vmatpush1.xpose.msra.mxu0 %v113
    %159 = vmatprep.subr.mxu0 0.0
    %160 = vmatpush1.xpose.msra.mxu0 %v116
    %161 = vmatprep.subr.mxu0 0.0
    %162 = vmatpush1.xpose.msra.mxu0 %v119
    %163 = vmatprep.subr.mxu0 0.0
    %164 = vmatpush1.xpose.msra.mxu0 %v122
    %165 = vmatprep.subr.mxu0 0.0
    %166 = vmatpush1.xpose.msra.mxu0 %v125
    %167 = vmatprep.subr.mxu0 0.0
    %168 = vmatpush1.xpose.msra.mxu0 %v128
    %169 = vmatprep.subr.mxu0 0.0
    %170 = vmatpush1.xpose.msra.mxu0 %v131
    %171 = vmatprep.subr.mxu0 0.0
    %172 = vmatpush1.xpose.msra.mxu0 %v134
    %173 = vmatprep.subr.mxu0 0.0
    %174 = vmatpush1.xpose.msra.mxu0 %v137
    %175 = vmatprep.subr.mxu0 0.0
    %176 = vmatpush1.xpose.msra.mxu0 %v140
    %177 = vmatprep.subr.mxu0 0.0
    %178 = vmatpush1.xpose.msra.mxu0 %v143
    %179 = vmatprep.subr.mxu0 0.0
    %180 = vmatpush1.xpose.msra.mxu0 %v146
    %181 = vmatprep.subr.mxu0 0.0
    %182 = vmatpush1.xpose.msra.mxu0 %v149
    %183 = vmatprep.subr.mxu0 0.0
    %184 = vmatpush1.xpose.msra.mxu0 0.0
    %185 = vmatprep.subr.mxu0 0.0
    %186 = vmatpush1.xpose.msra.mxu0 0.0
    %187 = vmatprep.subr.mxu0 0.0
    %188 = vmatpush1.xpose.msra.mxu0 0.0
    %189 = vmatprep.subr.mxu0 0.0
    %190 = vmatpush1.xpose.msra.mxu0 0.0
    %191 = vmatprep.subr.mxu0 0.0
    %192 = vmatpush1.xpose.msra.mxu0 0.0
    %193 = vmatprep.subr.mxu0 0.0
    %194 = vmatpush1.xpose.msra.mxu0 0.0
    %195 = vmatprep.subr.mxu0 0.0
    %196 = vmatpush1.xpose.msra.mxu0 0.0
    %197 = vmatprep.subr.mxu0 0.0
    %198 = vmatpush1.xpose.msra.mxu0 0.0
    %199 = vmatprep.subr.mxu0 0.0
    %200 = vmatpush1.xpose.msra.mxu0 0.0
    %201 = vmatprep.subr.mxu0 0.0
    %202 = vmatpush1.xpose.msra.mxu0 0.0
    %203 = vmatprep.subr.mxu0 0.0
    %204 = vmatpush1.xpose.msra.mxu0 0.0
    %205 = vmatprep.subr.mxu0 0.0
    %206 = vmatpush1.xpose.msra.mxu0 0.0
    %207 = vmatprep.subr.mxu0 0.0
    %208 = vmatpush1.xpose.msra.mxu0 0.0
    %209 = vmatprep.subr.mxu0 0.0
    %210 = vmatpush1.xpose.msra.mxu0 0.0
    %211 = vmatprep.subr.mxu0 0.0
    %212 = vmatpush1.xpose.msra.mxu0 0.0
    %213 = vmatprep.subr.mxu0 0.0
    %214 = vmatpush1.xpose.msra.mxu0 0.0
    %215 = vmatprep.mubr.f32.mxu0 0.0
    %216 = vmatmul.mubr.f32.gmra.mrb[0].mxu0 %v92
    %v217 = vpop.f32.mrb[0].mxu0
    %v218 = vadd.f32 %v86, %v217
    %v219 = vpop.f32.mrb[0].mxu0
    %220 = vmatprep.mubr.f32.mxu0 0.0
    %221 = vmatmul.mubr.f32.gmra.mrb[0].mxu0 %v95
    %v222 = vpop.f32.mrb[0].mxu0
    %v223 = vadd.f32 %v87, %v222
    %v224 = vpop.f32.mrb[0].mxu0
    %225 = vmatprep.mubr.f32.mxu0 0.0
    %226 = vmatmul.mubr.f32.gmra.mrb[0].mxu0 %v98
    %v227 = vpop.f32.mrb[0].mxu0
    %v228 = vadd.f32 %v88, %v227
    %v229 = vpop.f32.mrb[0].mxu0
    %230 = vmatprep.mubr.f32.mxu0 0.0
    %231 = vmatmul.mubr.f32.gmra.mrb[0].mxu0 %v101
    %v232 = vpop.f32.mrb[0].mxu0
    %v233 = vadd.f32 %v89, %v232
    %v234 = vpop.f32.mrb[0].mxu0
    %235 = vdwg.mxu0
    %v236 = vld [vmem:[%s4] sm:$0xff]
    %v237 = vld [vmem:[%s4 + $0x8] sm:$0xff]
    %v238 = vld [vmem:[%s4 + $0x10] sm:$0xff]
    %v239 = vld [vmem:[%s4 + $0x18] sm:$0xff]
    %241 = vset.pattern.permute.xlu0 0
    %242 = vperm.xlu0 %241, %v236
    %v243 = vpop.permute.xlu0 %242
    %246 = vset.pattern.permute.xlu0 0
    %247 = vperm.xlu0 %246, %v237
    %v248 = vpop.permute.xlu0 %247
    %251 = vset.pattern.permute.xlu0 0
    %252 = vperm.xlu0 %251, %v238
    %v253 = vpop.permute.xlu0 %252
    %256 = vset.pattern.permute.xlu0 0
    %257 = vperm.xlu0 %256, %v239
    %v258 = vpop.permute.xlu0 %257
    %v260 = vadd.f32 %v218, %v243
    %v261 = vadd.f32 %v223, %v248
    %v262 = vadd.f32 %v228, %v253
    %v263 = vadd.f32 %v233, %v258
    %v264 = vmax.f32 %v260, 0.0
    %v265 = vmax.f32 %v261, 0.0
    %v266 = vmax.f32 %v262, 0.0
    %v267 = vmax.f32 %v263, 0.0
    %v268 = vld [vmem:[%s5] sm:$0xff]
    %v269 = vld [vmem:[%s5 + $0x8] sm:$0xff]
    %v270 = vld [vmem:[%s5 + $0x10] sm:$0xff]
    %v271 = vld [vmem:[%s5 + $0x18] sm:$0xff]
    %v272 = vld [vmem:[%s6] sm:$0xff]
    %v273 = vld [vmem:[%s6 + $0x8] sm:$0xff]
    %v274 = vld [vmem:[%s6 + $0x10] sm:$0xff]
    %v275 = vld [vmem:[%s6 + $0x18] sm:$0xff]
    %277 = vset.pattern.permute.xlu0 0
    %278 = vperm.xlu0 %277, %v272
    %v279 = vpop.permute.xlu0 %278
    %282 = vset.pattern.permute.xlu0 0
    %283 = vperm.xlu0 %282, %v273
    %v284 = vpop.permute.xlu0 %283
    %287 = vset.pattern.permute.xlu0 0
    %288 = vperm.xlu0 %287, %v274
    %v289 = vpop.permute.xlu0 %288
    %292 = vset.pattern.permute.xlu0 0
    %293 = vperm.xlu0 %292, %v275
    %v294 = vpop.permute.xlu0 %293
    %vm296 = vcmask 261120
    %v298 = vsel %vm296, %v268, 0
    %v301 = vsel %vm296, %v269, 0
    %v304 = vsel %vm296, %v270, 0
    %v307 = vsel %vm296, %v271, 0
    %309 = vmatprep.subr.mxu0 0.0
    %310 = vmatpush1.msra.mxu0 %v264
    %311 = vmatprep.subr.mxu0 0.0
    %312 = vmatpush1.msra.mxu0 %v265
    %313 = vmatprep.subr.mxu0 0.0
    %314 = vmatpush1.msra.mxu0 %v266
    %315 = vmatprep.subr.mxu0 0.0
    %316 = vmatpush1.msra.mxu0 %v267
    %317 = vmatprep.subr.mxu0 0.0
    %318 = vmatpush1.msra.mxu0 0.0
    %319 = vmatprep.subr.mxu0 0.0
    %320 = vmatpush1.msra.mxu0 0.0
    %321 = vmatprep.subr.mxu0 0.0
    %322 = vmatpush1.msra.mxu0 0.0
    %323 = vmatprep.subr.mxu0 0.0
    %324 = vmatpush1.msra.mxu0 0.0
    %325 = vmatprep.subr.mxu0 0.0
    %326 = vmatpush1.msra.mxu0 0.0
    %327 = vmatprep.subr.mxu0 0.0
    %328 = vmatpush1.msra.mxu0 0.0
    %329 = vmatprep.subr.mxu0 0.0
    %330 = vmatpush1.msra.mxu0 0.0
    %331 = vmatprep.subr.mxu0 0.0
    %332 = vmatpush1.msra.mxu0 0.0
    %333 = vmatprep.subr.mxu0 0.0
    %334 = vmatpush1.msra.mxu0 0.0
    %335 = vmatprep.subr.mxu0 0.0
    %336 = vmatpush1.msra.mxu0 0.0
    %337 = vmatprep.subr.mxu0 0.0
    %338 = vmatpush1.msra.mxu0 0.0
    %339 = vmatprep.subr.mxu0 0.0
    %340 = vmatpush1.msra.mxu0 0.0
    %341 = vmatprep.subr.mxu0 0.0
    %342 = vmatpush1.msra.mxu0 0.0
    %343 = vmatprep.subr.mxu0 0.0
    %344 = vmatpush1.msra.mxu0 0.0
    %345 = vmatprep.subr.mxu0 0.0
    %346 = vmatpush1.msra.mxu0 0.0
    %347 = vmatprep.subr.mxu0 0.0
    %348 = vmatpush1.msra.mxu0 0.0
    %349 = vmatprep.subr.mxu0 0.0
    %350 = vmatpush1.msra.mxu0 0.0
    %351 = vmatprep.subr.mxu0 0.0
    %352 = vmatpush1.msra.mxu0 0.0
    %353 = vmatprep.subr.mxu0 0.0
    %354 = vmatpush1.msra.mxu0 0.0
    %355 = vmatprep.subr.mxu0 0.0
    %356 = vmatpush1.msra.mxu0 0.0
    %357 = vmatprep.subr.mxu0 0.0
    %358 = vmatpush1.msra.mxu0 0.0
    %359 = vmatprep.subr.mxu0 0.0
    %360 = vmatpush1.msra.mxu0 0.0
    %361 = vmatprep.subr.mxu0 0.0
    %362 = vmatpush1.msra.mxu0 0.0
    %363 = vmatprep.subr.mxu0 0.0
    %364 = vmatpush1.msra.mxu0 0.0
    %365 = vmatprep.subr.mxu0 0.0
    %366 = vmatpush1.msra.mxu0 0.0
    %367 = vmatprep.subr.mxu0 0.0
    %368 = vmatpush1.msra.mxu0 0.0
    %369 = vmatprep.subr.mxu0 0.0
    %370 = vmatpush1.msra.mxu0 0.0
    %371 = vmatprep.subr.mxu0 0.0
    %372 = vmatpush1.msra.mxu0 0.0
    %373 = vmatprep.mubr.f32.mxu0 0.0
    %374 = vmatmul.mubr.f32.gmra.mrb[0].mxu0 %v298
    %v375 = vpop.f32.mrb[0].mxu0
    %v376 = vadd.f32 %v279, %v375
    %v377 = vpop.f32.mrb[0].mxu0
    %378 = vmatprep.mubr.f32.mxu0 0.0
    %379 = vmatmul.mubr.f32.gmra.mrb[0].mxu0 %v301
    %v380 = vpop.f32.mrb[0].mxu0
    %v381 = vadd.f32 %v284, %v380
    %v382 = vpop.f32.mrb[0].mxu0
    %383 = vmatprep.mubr.f32.mxu0 0.0
    %384 = vmatmul.mubr.f32.gmra.mrb[0].mxu0 %v304
    %v385 = vpop.f32.mrb[0].mxu0
    %v386 = vadd.f32 %v289, %v385
    %v387 = vpop.f32.mrb[0].mxu0
    %388 = vmatprep.mubr.f32.mxu0 0.0
    %389 = vmatmul.mubr.f32.gmra.mrb[0].mxu0 %v307
    %v390 = vpop.f32.mrb[0].mxu0
    %v391 = vadd.f32 %v294, %v390
    %v392 = vpop.f32.mrb[0].mxu0
    %393 = vdwg.mxu0
    %v394 = vmax.f32 %v376, 0.0
    %v395 = vmax.f32 %v381, 0.0
    %v396 = vmax.f32 %v386, 0.0
    %v397 = vmax.f32 %v391, 0.0
    %v398 = vld [vmem:[%s7] sm:$0xff]
    %v399 = vld [vmem:[%s7 + $0x8] sm:$0xff]
    %v400 = vld [vmem:[%s7 + $0x10] sm:$0xff]
    %v401 = vld [vmem:[%s7 + $0x18] sm:$0xff]
    %403 = vset.pattern.permute.xlu0 0
    %404 = vperm.xlu0 %403, %v398
    %v405 = vpop.permute.xlu0 %404
    %408 = vset.pattern.permute.xlu0 0
    %409 = vperm.xlu0 %408, %v399
    %v410 = vpop.permute.xlu0 %409
    %413 = vset.pattern.permute.xlu0 0
    %414 = vperm.xlu0 %413, %v400
    %v415 = vpop.permute.xlu0 %414
    %418 = vset.pattern.permute.xlu0 0
    %419 = vperm.xlu0 %418, %v401
    %v420 = vpop.permute.xlu0 %419
    %v422 = vmul.f32 %v394, %v405
    %v423 = vmul.f32 %v395, %v410
    %v424 = vmul.f32 %v396, %v415
    %v425 = vmul.f32 %v397, %v420
    %v426 = vadd.f32 %v422, %v423
    %v427 = vadd.f32 %v426, %v424
    %v428 = vadd.f32 %v427, %v425
    %v429 = vrot.slane %v428, 4
    %v430 = vadd.f32 %v428, %v429
    %v431 = vrot.slane %v430, 2
    %v432 = vadd.f32 %v430, %v431
    %v433 = vrot.slane %v432, 1
    %v434 = vadd.f32 %v432, %v433
    %v435 = vld [vmem:[#allocation2] sm:$0x1]
    %437 = vset.pattern.permute.xlu0 0
    %438 = vperm.xlu0 %437, %v435
    %v439 = vpop.permute.xlu0 %438
    %v441 = vlaneseq
    %v442 = vshrl.u32 %v441, 7
    %v443 = vsub.s32 0, %v442
    %v444 = vrot.slane %v439, %v443
    %v445 = vadd.f32 %v434, %v444
    %v446 = vxor.u32 %v445, 2147483648
    %v447 = vmul.f32 %v446, 1.442695
    %v448 = vpow.pop %v447
    %v449 = vadd.f32 %v448, 1.0
    %v450 = vrcp.pop %v449
    %v451 = vmul.f32 1.0, %v450
    %452 = vst [vmem:[#allocation3] sm:$0x1] %v451
    // Predicated region
    $region38: #{tpu_custom_call.1} parent=1 // pred_check
      _
    $region39: #{tpu_custom_call.1} parent=1 // pred_check_branch
      %454 = sbr.rel (0) target = $region41
    $region40: #{tpu_custom_call.1} parent=1 // pred_region
      %s456 = ssub.s32 16, 16
      %457 = vsyncadd [#allocation4], %s456
      %s459 = sshll.u32 [#allocation3], 4
      %s460 = int_to_ptr.vmem [resolvable:$true] %s459
      %462 = dma.vmem_to_hbm [thread:$0]  %s460, 16, %s9, [#allocation4]
    $region41: #{tpu_custom_call.1} parent=1 // pred_fallthru
      _
    // Predicated region
    $region42: #{tpu_custom_call.1} parent=1 // pred_check
      _
    $region43: #{tpu_custom_call.1} parent=1 // pred_check_branch
      %464 = sbr.rel (0) target = $region45
    $region44: #{tpu_custom_call.1} parent=1 // pred_region
      %465 = dma.done [#allocation4], 16
    $region45: #{tpu_custom_call.1} parent=1 // pred_fallthru
      _
    %466 = vsyncpa [#allocation4], 1

</llo_original>
